<compile_context>
chip_gen: v7x
topology: tpu7x:2x2x1
jax: 0.10.0
libtpu: 0.0.40
codegen_flags: <defaults>
</compile_context>

<pallas_src>
import functools

import numpy as np

import jax
import jax.numpy as jnp
from jax.experimental import pallas as pl
from jax.experimental.pallas import tpu as pltpu


def _round_up(x, m):
    return ((x + m - 1) // m) * m


# ----------------------------------------------------------------------------
# Pass A: tiled ConvTranspose3d contraction + per-column BN statistics epilogue
# ----------------------------------------------------------------------------
def _matmul_colstats_kernel_single_k(x_ref, w_ref, y_ref, csum_ref, csq_ref):
    """Single-K-step fast path: no f32 accumulator scratch, one store per tile."""
    @pl.when(pl.program_id(1) == 0)
    def _():
        csum_ref[...] = jnp.zeros_like(csum_ref)
        csq_ref[...] = jnp.zeros_like(csq_ref)

    y = jnp.dot(x_ref[...], w_ref[...], preferred_element_type=jnp.float32)
    y_ref[...] = y.astype(y_ref.dtype)
    # BN stats are layout-invariant: per-column sums over all M rows.
    csum_ref[...] += jnp.sum(y, axis=0, keepdims=True)
    csq_ref[...] += jnp.sum(y * y, axis=0, keepdims=True)


def _matmul_colstats_kernel(x_ref, w_ref, y_ref, csum_ref, csq_ref, acc_ref):
    """General tiled-K path with f32 VMEM accumulator."""
    i, kk = pl.program_id(1), pl.program_id(2)

    @pl.when(kk == 0)
    def _():
        acc_ref[...] = jnp.zeros_like(acc_ref)

    @pl.when(jnp.logical_and(i == 0, kk == 0))
    def _():
        csum_ref[...] = jnp.zeros_like(csum_ref)
        csq_ref[...] = jnp.zeros_like(csq_ref)

    acc_ref[...] += jnp.dot(x_ref[...], w_ref[...],
                            preferred_element_type=jnp.float32)

    @pl.when(kk == pl.num_programs(2) - 1)
    def _():
        y = acc_ref[...]
        y_ref[...] = y.astype(y_ref.dtype)
        csum_ref[...] += jnp.sum(y, axis=0, keepdims=True)
        csq_ref[...] += jnp.sum(y * y, axis=0, keepdims=True)


def pallas_matmul_colstats(x_flat, w_flat, *, tm=512, tn_max=512, tk_max=512):
    """(M, K) @ (K, N) -> f32 (m_pad, n_pad), plus per-column sum / sumsq (1, n_pad).

    M is padded to a multiple of the M-tile, K/N are padded to a tile multiple
    only when they are large (zero padding contributes nothing to the product
    or the stats).  Tiles stay small (<= ~1 MiB each) so double-buffered inputs
    + output + accumulator fit comfortably under a 32 MiB VMEM limit (v7x-safe).
    """
    M, K = x_flat.shape
    K2, N = w_flat.shape
    assert K == K2
    in_bytes = jnp.dtype(x_flat.dtype).itemsize

    tm = min(tm, _round_up(M, 8))
    m_pad = _round_up(M, tm)

    if N <= tn_max:                       # small N: full extent, no padding
        tn, n_pad = N, N
    else:
        tn = next((t for t in (512, 256, 128) if N % t == 0), 256)
        n_pad = _round_up(N, tn)

    if K <= tk_max:                       # tiny contraction dim: single K step
        tk, k_pad = K, K
    else:                                 # always tile; pad instead of tk=K
        tk = next((t for t in (512, 256, 128) if K % t == 0), 256)
        k_pad = _round_up(K, tk)

    xp = x_flat
    if (m_pad, k_pad) != (M, K):
        xp = jnp.pad(x_flat, ((0, m_pad - M), (0, k_pad - K)))
    wp = w_flat
    if (k_pad, n_pad) != (K, N):
        wp = jnp.pad(w_flat, ((0, k_pad - K), (0, n_pad - N)))

    grid_n, grid_m, grid_k = n_pad // tn, m_pad // tm, k_pad // tk

    out_shapes = (jax.ShapeDtypeStruct((m_pad, n_pad), jnp.float32),
                  jax.ShapeDtypeStruct((1, n_pad), jnp.float32),
                  jax.ShapeDtypeStruct((1, n_pad), jnp.float32))
    cost = pl.CostEstimate(
        flops=2 * m_pad * k_pad * n_pad,
        transcendentals=0,
        bytes_accessed=in_bytes * (m_pad * k_pad + k_pad * n_pad)
        + 4 * m_pad * n_pad,
    )

    if grid_k == 1:
        grid = (grid_n, grid_m)
        in_specs = [pl.BlockSpec((tm, tk), lambda j, i: (i, 0)),
                    pl.BlockSpec((tk, tn), lambda j, i: (0, j))]
        out_specs = [pl.BlockSpec((tm, tn), lambda j, i: (i, j)),
                     pl.BlockSpec((1, tn), lambda j, i: (0, j)),
                     pl.BlockSpec((1, tn), lambda j, i: (0, j))]
        kernel = _matmul_colstats_kernel_single_k
        scratch = []
        dims = ("parallel", "arbitrary")          # i accumulates the stats block
    else:
        grid = (grid_n, grid_m, grid_k)
        in_specs = [pl.BlockSpec((tm, tk), lambda j, i, kk: (i, kk)),
                    pl.BlockSpec((tk, tn), lambda j, i, kk: (kk, j))]
        out_specs = [pl.BlockSpec((tm, tn), lambda j, i, kk: (i, j)),
                     pl.BlockSpec((1, tn), lambda j, i, kk: (0, j)),
                     pl.BlockSpec((1, tn), lambda j, i, kk: (0, j))]
        kernel = _matmul_colstats_kernel
        scratch = [pltpu.VMEM((tm, tn), jnp.float32)]
        dims = ("parallel", "arbitrary", "arbitrary")

    return pl.pallas_call(
        kernel,
        out_shape=out_shapes,
        grid_spec=pltpu.PrefetchScalarGridSpec(
            num_scalar_prefetch=0,
            grid=grid,
            in_specs=in_specs,
            out_specs=out_specs,
            scratch_shapes=scratch,
        ),
        compiler_params=pltpu.CompilerParams(
            dimension_semantics=dims,
            vmem_limit_bytes=32 * 1024 * 1024,   # v7x-safe (64 MiB total per TC)
        ),
        cost_estimate=cost,
    )(xp, wp)


# ----------------------------------------------------------------------------
# Pass B (stride == kernel): fused interleave-scatter + BN apply + ReLU
# ----------------------------------------------------------------------------
def _build_interleave_onehots(C, k, H, W, n_pad):
    """Constant 0/1 matrices that express the deconv interleave as plain matmuls."""
    k2 = k * k
    Ho, Wo = H * k, W * k
    R = np.zeros((k, n_pad, C * k2), np.float32)   # per-kw column gather
    F = np.zeros((k, W, Wo), np.float32)           # per-kw  w -> w*k+kw scatter
    Q = np.zeros((C * k * Ho, H * C * k2), np.float32)  # (h,c,kd,kh)->(c,kd,h*k+kh)
    for kw in range(k):
        for c in range(C):
            for kd in range(k):
                for kh in range(k):
                    col = ((c * k + kd) * k + kh) * k + kw
                    R[kw, col, (c * k + kd) * k + kh] = 1.0
        for w in range(W):
            F[kw, w, w * k + kw] = 1.0
    for c in range(C):
        for kd in range(k):
            for h in range(H):
                for kh in range(k):
                    Q[(c * k + kd) * Ho + h * k + kh,
                      h * (C * k2) + (c * k + kd) * k + kh] = 1.0
    return jnp.asarray(R), jnp.asarray(F), jnp.asarray(Q)


def _interleave_bn_relu_kernel(y_ref, scale_ref, shift_ref, r_ref, f_ref, q_ref,
                               o_ref, *, H, W, C, k):
    """One (n, d) slab: (H*W, Cout*k^3) flat tile -> (1, Cout, k, Ho, Wo) NCDHW block.

    Only well-supported ops are used: elementwise, one-hot MXU matmuls,
    leading-dim reshapes and a minor-dims transpose (XLU).
    """
    k2 = k * k
    Wo = W * k
    # BN-apply + ReLU are elementwise and commute with the permutation, so do
    # them on the flat tile first (padded columns are dropped by R below).
    a = jnp.maximum(y_ref[...] * scale_ref[...] + shift_ref[...], 0.0)

    # (w, kw) interleave: for each kw, gather that kw's columns, move (c,kd,kh)
    # into rows (batched minor transpose), and scatter w -> w*k+kw.
    t = jnp.zeros((H * C * k2, Wo), jnp.float32)
    for kw in range(k):
        b = jnp.dot(a, r_ref[kw], preferred_element_type=jnp.float32)  # (HW, C*k2)
        b = b.reshape(H, W, C * k2)
        b = jnp.swapaxes(b, 1, 2)                                      # (H, C*k2, W)
        b = b.reshape(H * C * k2, W)
        t = t + jnp.dot(b, f_ref[kw], preferred_element_type=jnp.float32)

    # (h, kh) interleave + move (c, kd) to the front, in one one-hot matmul.
    o2 = jnp.dot(q_ref[...], t, preferred_element_type=jnp.float32)    # (C*k*Ho, Wo)
    o_ref[...] = o2.reshape(o_ref.shape)


def pallas_interleave_bn_relu(y2d, scale_cols, shift_cols, *, N, D, H, W, C, k):
    Ho, Wo, Do = H * k, W * k, D * k
    n_pad = y2d.shape[1]
    R, F, Q = _build_interleave_onehots(C, k, H, W, n_pad)
    kern = functools.partial(_interleave_bn_relu_kernel, H=H, W=W, C=C, k=k)
    return pl.pallas_call(
        kern,
        out_shape=jax.ShapeDtypeStruct((N, C, Do, Ho, Wo), jnp.float32),
        grid_spec=pltpu.PrefetchScalarGridSpec(
            num_scalar_prefetch=0,
            grid=(N, D),
            in_specs=[
                pl.BlockSpec((H * W, n_pad), lambda n, d: (n * D + d, 0)),
                pl.BlockSpec((1, n_pad), lambda n, d: (0, 0)),
                pl.BlockSpec((1, n_pad), lambda n, d: (0, 0)),
                pl.BlockSpec((k, n_pad, C * k * k), lambda n, d: (0, 0, 0)),
                pl.BlockSpec((k, W, Wo), lambda n, d: (0, 0, 0)),
                pl.BlockSpec((C * k * Ho, H * C * k * k), lambda n, d: (0, 0, 0)),
            ],
            out_specs=pl.BlockSpec((1, C, k, Ho, Wo),
                                   lambda n, d: (n, 0, d, 0, 0)),
        ),
        compiler_params=pltpu.CompilerParams(
            dimension_semantics=("parallel", "parallel"),
        ),
    )(y2d, scale_cols, shift_cols, R, F, Q)


# ----------------------------------------------------------------------------
# Fallback: elementwise BN-apply + ReLU over an already-NCDHW tensor (N, C, S)
# ----------------------------------------------------------------------------
def _bn_apply_relu_kernel(x_ref, scale_ref, shift_ref, o_ref):
    y = x_ref[...] * scale_ref[...][None, :, :] + shift_ref[...][None, :, :]
    o_ref[...] = jnp.maximum(y, 0.0)


def pallas_bn_apply_relu(x_ncs, scale_c, shift_c):
    N, C, S = x_ncs.shape
    ts = S
    for t in (2048, 1024, 512, 256, 128):
        if S % t == 0 and N * C * t * 4 <= 8 * 1024 * 1024:
            ts = t
            break
    return pl.pallas_call(
        _bn_apply_relu_kernel,
        out_shape=jax.ShapeDtypeStruct((N, C, S), jnp.float32),
        grid_spec=pltpu.PrefetchScalarGridSpec(
            num_scalar_prefetch=0,
            grid=(S // ts,),
            in_specs=[pl.BlockSpec((N, C, ts), lambda i: (0, 0, i)),
                      pl.BlockSpec((C, 1), lambda i: (0, 0)),
                      pl.BlockSpec((C, 1), lambda i: (0, 0))],
            out_specs=pl.BlockSpec((N, C, ts), lambda i: (0, 0, i)),
        ),
        compiler_params=pltpu.CompilerParams(dimension_semantics=("parallel",)),
    )(x_ncs, scale_c.reshape(C, 1), shift_c.reshape(C, 1))


# ----------------------------------------------------------------------------
# GeneraterBlock forward
# ----------------------------------------------------------------------------
def generater_block_forward(x, weight, bias, gamma, beta, *, kernel, stride,
                            eps=1e-5, use_bf16=True, fuse_interleave=True):
    """x: (N, Cin, D, H, W); weight: (Cin, Cout, k, k, k); bias: (Cout,)."""
    N, Cin, D, H, W = x.shape
    Cout = weight.shape[1]
    k, s = kernel, stride
    Do, Ho, Wo = (D - 1) * s + k, (H - 1) * s + k, (W - 1) * s + k
    k3 = k ** 3
    M = N * D * H * W
    n_cols = Cout * k3

    # --- Pass A: contraction + per-column stats ------------------------------
    x_flat = jnp.transpose(x, (0, 2, 3, 4, 1)).reshape(M, Cin)
    w_flat = weight.reshape(Cin, n_cols)
    if use_bf16:  # MXU-native operands; accumulation and y stay f32
        x_flat = x_flat.astype(jnp.bfloat16)
        w_flat = w_flat.astype(jnp.bfloat16)
    y2d, csum, csq = pallas_matmul_colstats(x_flat, w_flat)

    # The ConvTranspose bias is intentionally NOT added: a per-channel constant
    # is exactly cancelled by the training-mode BatchNorm below (mean shifts by
    # bias, variance unchanged), so the final output is unchanged and we save a
    # full HBM read-modify-write over the upsampled tensor.
    del bias

    if s == k:
        # Non-overlapping deconv: BN stats straight from the matmul epilogue
        # (per-channel stats are layout-invariant over y_flat).
        col_sum = csum[0, :n_cols].reshape(Cout, k3).sum(axis=1)
        col_sq = csq[0, :n_cols].reshape(Cout, k3).sum(axis=1)
        cnt = jnp.float32(M * k3)                 # == N*Do*Ho*Wo per channel
        mean = col_sum / cnt
        # NOTE: E[x^2]-E[x]^2 in f32 with a >=0 clamp; a shifted/Welford combine
        # would be more robust for extreme |mean|/std ratios.
        var = jnp.maximum(col_sq / cnt - mean * mean, 0.0)   # biased (training)
        inv = jax.lax.rsqrt(var + eps)
        scale_c = gamma * inv
        shift_c = beta - mean * scale_c

        if fuse_interleave and (H * W) % 8 == 0:
            n_pad = y2d.shape[1]
            pad = n_pad - n_cols
            scale_cols = jnp.pad(jnp.repeat(scale_c, k3), (0, pad)).reshape(1, n_pad)
            shift_cols = jnp.pad(jnp.repeat(shift_c, k3), (0, pad)).reshape(1, n_pad)
            return pallas_interleave_bn_relu(y2d, scale_cols, shift_cols,
                                             N=N, D=D, H=H, W=W, C=Cout, k=k)

        # Unfused fallback: XLA interleave + elementwise Pallas BN/ReLU.
        y = y2d[:M, :n_cols].reshape(N, D, H, W, Cout, k, k, k)
        out = jnp.transpose(y, (0, 4, 1, 5, 2, 6, 3, 7)).reshape(
            N, Cout, Do, Ho, Wo)
        out = pallas_bn_apply_relu(out.reshape(N, Cout, -1), scale_c, shift_c)
        return out.reshape(N, Cout, Do, Ho, Wo)

    # General (possibly overlapping) stride < kernel path.
    # TODO(synk): replace the k^3 XLA scatter-adds with a fused Pallas
    # accumulate-in-VMEM kernel (one output write instead of k^3 RMWs).
    y = y2d[:M, :n_cols].reshape(N, D, H, W, Cout, k, k, k)
    out = jnp.zeros((N, Cout, Do, Ho, Wo), jnp.float32)
    for kd in range(k):
        for kh in range(k):
            for kw in range(k):
                contrib = jnp.transpose(y[:, :, :, :, :, kd, kh, kw],
                                        (0, 4, 1, 2, 3))
                out = out.at[:, :,
                             kd:kd + D * s:s,
                             kh:kh + H * s:s,
                             kw:kw + W * s:s].add(contrib)
    mean = out.mean(axis=(0, 2, 3, 4))
    var = ((out - mean.reshape(1, -1, 1, 1, 1)) ** 2).mean(axis=(0, 2, 3, 4))
    inv = jax.lax.rsqrt(var + eps)
    scale_c = gamma * inv
    shift_c = beta - mean * scale_c
    outp = pallas_bn_apply_relu(out.reshape(N, Cout, -1), scale_c, shift_c)
    return outp.reshape(N, Cout, Do, Ho, Wo)


if __name__ == "__main__":
    # Small shapes: batch=2, in_dim=4, out_dim=8, spatial=4, kernel=2, stride=2.
    N, Cin, Cout, D, k, s = 2, 4, 8, 4, 2, 2

    key = jax.random.PRNGKey(0)
    kx, kw_, kb = jax.random.split(key, 3)
    x = jax.random.normal(kx, (N, Cin, D, D, D), dtype=jnp.float32)

    fan = Cin * k * k * k
    weight = jax.random.uniform(kw_, (Cin, Cout, k, k, k), jnp.float32,
                                minval=-1.0, maxval=1.0) / jnp.sqrt(fan)
    bias = jax.random.uniform(kb, (Cout,), jnp.float32,
                              minval=-1.0, maxval=1.0) / jnp.sqrt(fan)
    gamma = jnp.ones((Cout,), jnp.float32)    # BatchNorm3d default weight
    beta = jnp.zeros((Cout,), jnp.float32)    # BatchNorm3d default bias

    fwd_fused = jax.jit(functools.partial(generater_block_forward,
                                          kernel=k, stride=s,
                                          fuse_interleave=True))
    fwd_plain = jax.jit(functools.partial(generater_block_forward,
                                          kernel=k, stride=s,
                                          fuse_interleave=False))
    try:
        out = jax.block_until_ready(fwd_fused(x, weight, bias, gamma, beta))
    except Exception:
        # Safe fallback if the fused interleave kernel fails to lower on this
        # backend: XLA interleave + elementwise Pallas BN/ReLU (same numerics).
        out = jax.block_until_ready(fwd_plain(x, weight, bias, gamma, beta))

    expected_shape = (N, Cout, (D - 1) * s + k, (D - 1) * s + k, (D - 1) * s + k)
    assert out.shape == expected_shape, (out.shape, expected_shape)

    # Pure-JAX reference of the module forward (incl. bias, training-mode BN, ReLU).
    y8 = jnp.einsum('nizyx,ioabc->nzyxoabc', x, weight)
    ref = jnp.transpose(y8, (0, 4, 1, 5, 2, 6, 3, 7)).reshape(expected_shape)
    ref = ref + bias.reshape(1, Cout, 1, 1, 1)
    mu = ref.mean(axis=(0, 2, 3, 4), keepdims=True)
    var = ((ref - mu) ** 2).mean(axis=(0, 2, 3, 4), keepdims=True)
    ref = (ref - mu) * jax.lax.rsqrt(var + 1e-5)
    ref = ref * gamma.reshape(1, Cout, 1, 1, 1) + beta.reshape(1, Cout, 1, 1, 1)
    ref = jnp.maximum(ref, 0.0)

    err = float(jnp.max(jnp.abs(out - ref)))
    assert err < 1e-1, f"max abs err vs reference: {err}"
    assert bool(jnp.all(jnp.isfinite(out)))
    assert bool(jnp.all(out >= 0.0))  # ReLU
    print("KERNEL_OK")
</pallas_src>

<mosaic_0001>
module attributes {stable_mosaic.version = 11 : i64} {
  func.func @_matmul_colstats_kernel_single_k(%arg0: i32, %arg1: i32, %arg2: memref<128x4xbf16, #tpu.memory_space<vmem>>, %arg3: memref<4x64xbf16, #tpu.memory_space<vmem>>, %arg4: memref<128x64xf32, #tpu.memory_space<vmem>>, %arg5: memref<1x64xf32, #tpu.memory_space<vmem>>, %arg6: memref<1x64xf32, #tpu.memory_space<vmem>>) attributes {dimension_semantics = [#tpu.dimension_semantics<parallel>, #tpu.dimension_semantics<arbitrary>], iteration_bounds = array<i64: 1, 1>, scalar_prefetch = 0 : i64, scratch_operands = 0 : i64, tpu.core_type = #tpu.core_type<tc>, window_params = [{transform_indices = @transform_0, window_bounds = array<i64: 128, 4>}, {transform_indices = @transform_1, window_bounds = array<i64: 4, 64>}, {transform_indices = @transform_2, window_bounds = array<i64: 128, 64>}, {transform_indices = @transform_3, window_bounds = array<i64: 1, 64>}, {transform_indices = @transform_4, window_bounds = array<i64: 1, 64>}]} {
    %c0_i32 = arith.constant 0 : i32
    %0 = arith.cmpi eq, %arg1, %c0_i32 : i32
    %1 = arith.extui %0 : i1 to i32
    %c0_i32_0 = arith.constant 0 : i32
    %2 = arith.cmpi ne, %1, %c0_i32_0 : i32
    scf.if %2 {
      %cst_16 = arith.constant 0.000000e+00 : f32
      %18 = vector.broadcast %cst_16 : f32 to vector<1x64xf32>
      %c0_17 = arith.constant 0 : index
      %c0_18 = arith.constant 0 : index
      %19 = vector.load %arg5[%c0_17, %c0_18] : memref<1x64xf32, #tpu.memory_space<vmem>>, vector<1x64xf32>
      tpu.vector_store %arg5[%c0_17, %c0_18], %18 {strides = array<i32>} : memref<1x64xf32, #tpu.memory_space<vmem>>, vector<1x64xf32>,
      %cst_19 = arith.constant 0.000000e+00 : f32
      %20 = vector.broadcast %cst_19 : f32 to vector<1x64xf32>
      %c0_20 = arith.constant 0 : index
      %c0_21 = arith.constant 0 : index
      %21 = vector.load %arg6[%c0_20, %c0_21] : memref<1x64xf32, #tpu.memory_space<vmem>>, vector<1x64xf32>
      tpu.vector_store %arg6[%c0_20, %c0_21], %20 {strides = array<i32>} : memref<1x64xf32, #tpu.memory_space<vmem>>, vector<1x64xf32>,
    } else {
    }
    %c0 = arith.constant 0 : index
    %c0_1 = arith.constant 0 : index
    %3 = vector.load %arg2[%c0, %c0_1] : memref<128x4xbf16, #tpu.memory_space<vmem>>, vector<128x4xbf16>
    %c0_2 = arith.constant 0 : index
    %c0_3 = arith.constant 0 : index
    %4 = vector.load %arg3[%c0_2, %c0_3] : memref<4x64xbf16, #tpu.memory_space<vmem>>, vector<4x64xbf16>
    %cst = arith.constant dense<0.000000e+00> : vector<128x64xf32>
    %5 = tpu.matmul %3, %4, %cst {dimension_numbers = #tpu.dot_dimension_numbers<[1], [0], [0], [1], [0, 0, 1, 1], [], []>} : vector<128x4xbf16>, vector<4x64xbf16>, vector<128x64xf32> -> vector<128x64xf32>
    %c0_4 = arith.constant 0 : index
    %c0_5 = arith.constant 0 : index
    %6 = vector.load %arg4[%c0_4, %c0_5] : memref<128x64xf32, #tpu.memory_space<vmem>>, vector<128x64xf32>
    tpu.vector_store %arg4[%c0_4, %c0_5], %5 {strides = array<i32>} : memref<128x64xf32, #tpu.memory_space<vmem>>, vector<128x64xf32>,
    %c0_6 = arith.constant 0 : index
    %c0_7 = arith.constant 0 : index
    %7 = vector.load %arg5[%c0_6, %c0_7] : memref<1x64xf32, #tpu.memory_space<vmem>>, vector<1x64xf32>
    %cst_8 = arith.constant dense<0.000000e+00> : vector<64xf32>
    %8 = vector.multi_reduction <add>, %5, %cst_8 [0] : vector<128x64xf32> to vector<64xf32>
    %9 = vector.shape_cast %8 : vector<64xf32> to vector<1x64xf32>
    %10 = arith.addf %7, %9 : vector<1x64xf32>
    %c0_9 = arith.constant 0 : index
    %c0_10 = arith.constant 0 : index
    %11 = vector.load %arg5[%c0_9, %c0_10] : memref<1x64xf32, #tpu.memory_space<vmem>>, vector<1x64xf32>
    tpu.vector_store %arg5[%c0_9, %c0_10], %10 {strides = array<i32>} : memref<1x64xf32, #tpu.memory_space<vmem>>, vector<1x64xf32>,
    %c0_11 = arith.constant 0 : index
    %c0_12 = arith.constant 0 : index
    %12 = vector.load %arg6[%c0_11, %c0_12] : memref<1x64xf32, #tpu.memory_space<vmem>>, vector<1x64xf32>
    %13 = arith.mulf %5, %5 : vector<128x64xf32>
    %cst_13 = arith.constant dense<0.000000e+00> : vector<64xf32>
    %14 = vector.multi_reduction <add>, %13, %cst_13 [0] : vector<128x64xf32> to vector<64xf32>
    %15 = vector.shape_cast %14 : vector<64xf32> to vector<1x64xf32>
    %16 = arith.addf %12, %15 : vector<1x64xf32>
    %c0_14 = arith.constant 0 : index
    %c0_15 = arith.constant 0 : index
    %17 = vector.load %arg6[%c0_14, %c0_15] : memref<1x64xf32, #tpu.memory_space<vmem>>, vector<1x64xf32>
    tpu.vector_store %arg6[%c0_14, %c0_15], %16 {strides = array<i32>} : memref<1x64xf32, #tpu.memory_space<vmem>>, vector<1x64xf32>,
    return
  }
  func.func @transform_0(%arg0: i32, %arg1: i32) -> (i32, i32) {
    %c0_i32 = arith.constant 0 : i32
    %c0_i32_0 = arith.constant 0 : i32
    return %arg1, %c0_i32 : i32, i32
  }
  func.func @transform_1(%arg0: i32, %arg1: i32) -> (i32, i32) {
    %c0_i32 = arith.constant 0 : i32
    %c0_i32_0 = arith.constant 0 : i32
    return %c0_i32, %arg0 : i32, i32
  }
  func.func @transform_2(%arg0: i32, %arg1: i32) -> (i32, i32) {
    %c0_i32 = arith.constant 0 : i32
    return %arg1, %arg0 : i32, i32
  }
  func.func @transform_3(%arg0: i32, %arg1: i32) -> (i32, i32) {
    %c0_i32 = arith.constant 0 : i32
    %c0_i32_0 = arith.constant 0 : i32
    return %c0_i32, %arg0 : i32, i32
  }
  func.func @transform_4(%arg0: i32, %arg1: i32) -> (i32, i32) {
    %c0_i32 = arith.constant 0 : i32
    %c0_i32_0 = arith.constant 0 : i32
    return %c0_i32, %arg0 : i32, i32
  }
}

module attributes {stable_mosaic.version = 11 : i64} {
  func.func @_bn_apply_relu_kernel(%arg0: i32, %arg1: memref<2x8x512xf32, #tpu.memory_space<vmem>>, %arg2: memref<8x1xf32, #tpu.memory_space<vmem>>, %arg3: memref<8x1xf32, #tpu.memory_space<vmem>>, %arg4: memref<2x8x512xf32, #tpu.memory_space<vmem>>) attributes {dimension_semantics = [#tpu.dimension_semantics<parallel>], iteration_bounds = array<i64: 1>, scalar_prefetch = 0 : i64, scratch_operands = 0 : i64, tpu.core_type = #tpu.core_type<tc>, window_params = [{transform_indices = @transform_0, window_bounds = array<i64: 2, 8, 512>}, {pipeline_mode = #tpu.pipeline_mode<synchronous>, transform_indices = @transform_1, window_bounds = array<i64: 8, 1>}, {pipeline_mode = #tpu.pipeline_mode<synchronous>, transform_indices = @transform_2, window_bounds = array<i64: 8, 1>}, {transform_indices = @transform_3, window_bounds = array<i64: 2, 8, 512>}]} {
    %c0 = arith.constant 0 : index
    %c0_0 = arith.constant 0 : index
    %c0_1 = arith.constant 0 : index
    %0 = vector.load %arg1[%c0, %c0_0, %c0_1] : memref<2x8x512xf32, #tpu.memory_space<vmem>>, vector<2x8x512xf32>
    %c0_2 = arith.constant 0 : index
    %c0_3 = arith.constant 0 : index
    %1 = vector.load %arg2[%c0_2, %c0_3] : memref<8x1xf32, #tpu.memory_space<vmem>>, vector<8x1xf32>
    %2 = vector.shape_cast %1 : vector<8x1xf32> to vector<1x8x1xf32>
    %3 = vector.broadcast %2 : vector<1x8x1xf32> to vector<2x8x512xf32>
    %4 = arith.mulf %0, %3 : vector<2x8x512xf32>
    %c0_4 = arith.constant 0 : index
    %c0_5 = arith.constant 0 : index
    %5 = vector.load %arg3[%c0_4, %c0_5] : memref<8x1xf32, #tpu.memory_space<vmem>>, vector<8x1xf32>
    %6 = vector.shape_cast %5 : vector<8x1xf32> to vector<1x8x1xf32>
    %7 = vector.broadcast %6 : vector<1x8x1xf32> to vector<2x8x512xf32>
    %8 = arith.addf %4, %7 : vector<2x8x512xf32>
    %cst = arith.constant 0.000000e+00 : f32
    %9 = vector.broadcast %cst : f32 to vector<2x8x512xf32>
    %10 = arith.maximumf %8, %9 : vector<2x8x512xf32>
    %c0_6 = arith.constant 0 : index
    %c0_7 = arith.constant 0 : index
    %c0_8 = arith.constant 0 : index
    %11 = vector.load %arg4[%c0_6, %c0_7, %c0_8] : memref<2x8x512xf32, #tpu.memory_space<vmem>>, vector<2x8x512xf32>
    tpu.vector_store %arg4[%c0_6, %c0_7, %c0_8], %10 {strides = array<i32>} : memref<2x8x512xf32, #tpu.memory_space<vmem>>, vector<2x8x512xf32>,
    return
  }
  func.func @transform_0(%arg0: i32) -> (i32, i32, i32) {
    %c0_i32 = arith.constant 0 : i32
    %c0_i32_0 = arith.constant 0 : i32
    %c0_i32_1 = arith.constant 0 : i32
    return %c0_i32, %c0_i32_0, %arg0 : i32, i32, i32
  }
  func.func @transform_1(%arg0: i32) -> (i32, i32) {
    %c0_i32 = arith.constant 0 : i32
    %c0_i32_0 = arith.constant 0 : i32
    %c0_i32_1 = arith.constant 0 : i32
    return %c0_i32, %c0_i32_0 : i32, i32
  }
  func.func @transform_2(%arg0: i32) -> (i32, i32) {
    %c0_i32 = arith.constant 0 : i32
    %c0_i32_0 = arith.constant 0 : i32
    %c0_i32_1 = arith.constant 0 : i32
    return %c0_i32, %c0_i32_0 : i32, i32
  }
  func.func @transform_3(%arg0: i32) -> (i32, i32, i32) {
    %c0_i32 = arith.constant 0 : i32
    %c0_i32_0 = arith.constant 0 : i32
    %c0_i32_1 = arith.constant 0 : i32
    return %c0_i32, %c0_i32_0, %arg0 : i32, i32, i32
  }
}

</mosaic_0001>

<llo_original>
// kernel: squeeze.2
$region0: #{squeeze.2}
  %s0 = inlined_call_operand.vmem [shape: f32[64], index: 0, kind: input, shape index: {}]
  %s1 = inlined_call_operand.vmem [shape: f32[8,8], index: 1, kind: output, shape index: {}]
  $region1: #{squeeze.2} parent=0
    #allocation0 [shape = 'u8[4096]{0}', space=vmem, size = 0x1000, scoped, tag = 'scoped mem for input reshape']
    %s3 = sshllo.u32 0, 1
    %v4 = vld [vmem:[%s0] sm:%s3]
    %5 = vst [vmem:[#allocation0] sm:%s3] %v4
    %v6 = vld [vmem:[#allocation0] sm:$0x1]
    %vm7 = vcmask 64512
    %8 = vst.msk [vmem:[%s1] sm:$0x1] %vm7, %v6
    %v9 = vld [vmem:[#allocation0] sm:$0x1]
    %10 = vrot.lane.b32.xlu0 %v9, 120
    %v11 = vpop.permute.xlu0 %10
    %vm12 = vcmask 64512
    %s13 = scalar_lea.vmem %s1, 1
    %14 = vst.msk [vmem:[%s13] sm:$0x1] %vm12, %v11
    %v15 = vld [vmem:[#allocation0] sm:$0x1]
    %16 = vrot.lane.b32.xlu0 %v15, 112
    %v17 = vpop.permute.xlu0 %16
    %vm18 = vcmask 64512
    %s19 = scalar_lea.vmem %s1, 2
    %20 = vst.msk [vmem:[%s19] sm:$0x1] %vm18, %v17
    %v21 = vld [vmem:[#allocation0] sm:$0x1]
    %22 = vrot.lane.b32.xlu0 %v21, 104
    %v23 = vpop.permute.xlu0 %22
    %vm24 = vcmask 64512
    %s25 = scalar_lea.vmem %s1, 3
    %26 = vst.msk [vmem:[%s25] sm:$0x1] %vm24, %v23
    %v27 = vld [vmem:[#allocation0] sm:$0x1]
    %28 = vrot.lane.b32.xlu0 %v27, 96
    %v29 = vpop.permute.xlu0 %28
    %vm30 = vcmask 64512
    %s31 = scalar_lea.vmem %s1, 4
    %32 = vst.msk [vmem:[%s31] sm:$0x1] %vm30, %v29
    %v33 = vld [vmem:[#allocation0] sm:$0x1]
    %34 = vrot.lane.b32.xlu0 %v33, 88
    %v35 = vpop.permute.xlu0 %34
    %vm36 = vcmask 64512
    %s37 = scalar_lea.vmem %s1, 5
    %38 = vst.msk [vmem:[%s37] sm:$0x1] %vm36, %v35
    %v39 = vld [vmem:[#allocation0] sm:$0x1]
    %40 = vrot.lane.b32.xlu0 %v39, 80
    %v41 = vpop.permute.xlu0 %40
    %vm42 = vcmask 64512
    %s43 = scalar_lea.vmem %s1, 6
    %44 = vst.msk [vmem:[%s43] sm:$0x1] %vm42, %v41
    %v45 = vld [vmem:[#allocation0] sm:$0x1]
    %46 = vrot.lane.b32.xlu0 %v45, 72
    %v47 = vpop.permute.xlu0 %46
    %vm48 = vcmask 64512
    %s49 = scalar_lea.vmem %s1, 7
    %50 = vst.msk [vmem:[%s49] sm:$0x1] %vm48, %v47

// kernel: generater_block_forward.2
$region0: #{generater_block_forward.2}
  #allocation0 [shape = 'u32[]', space=smem, size = 0x4, offset = 0x4, fixed_abs, tag = 'smem constant byte address 0x4 - core index']
  #allocation1 [shape = 'u32[144,128]{1,0:T(1,128)}', space=vmem, size = 0x12000, scoped, tag = 'internal scratch']
  %s0 = inlined_call_operand.vmem [shape: bf16[128,4], index: 0, kind: input, shape index: {}]
  %s1 = inlined_call_operand.vmem [shape: bf16[4,64], index: 1, kind: input, shape index: {}]
  %s2 = inlined_call_operand.vmem [shape: f32[128,64], index: 2, kind: output, shape index: {0}]
  %s3 = inlined_call_operand.vmem [shape: f32[1,64], index: 3, kind: output, shape index: {1}]
  %s4 = inlined_call_operand.vmem [shape: f32[1,64], index: 4, kind: output, shape index: {2}]
  %5 = xla_tuple %s2, %s3, %s4
  %s6 = sld [smem:[#allocation0]]
  $region38: #{generater_block_forward.2} parent=0
    _
  %s8 = ssub.s32 1, %s6
  %s9 = scalar_select 0, %s8, %s6
  // Predicated region
  $region2: #{generater_block_forward.2} parent=0 // pred_check
    _
  $region3: #{generater_block_forward.2} parent=0 // pred_check_branch
    %11 = sbr.rel (0) target = $region5
  $region4: #{generater_block_forward.2} parent=0 // pred_region
    _
  $region5: #{generater_block_forward.2} parent=0 // pred_fallthru
    _
  // Predicated region
  $region6: #{generater_block_forward.2} parent=0 // pred_check
    _
  $region7: #{generater_block_forward.2} parent=0 // pred_check_branch
    %13 = sbr.rel (0) target = $region9
  $region8: #{generater_block_forward.2} parent=0 // pred_region
    _
  $region9: #{generater_block_forward.2} parent=0 // pred_fallthru
    _
  %p15 = scmp.eq.s32.totalorder 0, 0
  // Predicated region
  $region10: #{generater_block_forward.2} parent=0 // pred_check
    %p16 = pneg %p15
  $region11: #{generater_block_forward.2} parent=0 // pred_check_branch
    %18 = sbr.rel (%p16) target = $region13
  $region12: #{generater_block_forward.2} parent=0 // pred_region
    %vm19 = vcmask 516096
    %20 = vst.msk [vmem:[%s3] sm:$0x1] %vm19, 0.0
    %21 = vst.msk [vmem:[%s4] sm:$0x1] %vm19, 0.0
  $region13: #{generater_block_forward.2} parent=0 // pred_fallthru
    _
  %v22 = vld [vmem:[%s0] sm:$0xf]
  %v23 = vld [vmem:[%s0 + $0x4] sm:$0xf]
  %v24 = vld [vmem:[%s0 + $0x8] sm:$0xf]
  %v25 = vld [vmem:[%s0 + $0xc] sm:$0xf]
  %v26 = vld [vmem:[%s0 + $0x10] sm:$0xf]
  %v27 = vld [vmem:[%s0 + $0x14] sm:$0xf]
  %v28 = vld [vmem:[%s0 + $0x18] sm:$0xf]
  %v29 = vld [vmem:[%s0 + $0x1c] sm:$0xf]
  %v30 = vld [vmem:[%s0 + $0x20] sm:$0xf]
  %v31 = vld [vmem:[%s0 + $0x24] sm:$0xf]
  %v32 = vld [vmem:[%s0 + $0x28] sm:$0xf]
  %v33 = vld [vmem:[%s0 + $0x2c] sm:$0xf]
  %v34 = vld [vmem:[%s0 + $0x30] sm:$0xf]
  %v35 = vld [vmem:[%s0 + $0x34] sm:$0xf]
  %v36 = vld [vmem:[%s0 + $0x38] sm:$0xf]
  %v37 = vld [vmem:[%s0 + $0x3c] sm:$0xf]
  %v38 = vld [vmem:[%s1] sm:$0x3]
  %v55 = vunpack.c.l.b16 %v22
  %v56 = vunpack.c.l.b16 %v23
  %v57 = vunpack.c.l.b16 %v24
  %v58 = vunpack.c.l.b16 %v25
  %v59 = vunpack.c.l.b16 %v26
  %v60 = vunpack.c.l.b16 %v27
  %v61 = vunpack.c.l.b16 %v28
  %v62 = vunpack.c.l.b16 %v29
  %v63 = vunpack.c.l.b16 %v30
  %v64 = vunpack.c.l.b16 %v31
  %v65 = vunpack.c.l.b16 %v32
  %v66 = vunpack.c.l.b16 %v33
  %v67 = vunpack.c.l.b16 %v34
  %v68 = vunpack.c.l.b16 %v35
  %v69 = vunpack.c.l.b16 %v36
  %v70 = vunpack.c.l.b16 %v37
  %v71 = vpack.c.b16 %v56, %v55
  %v72 = vpack.c.b16 %v58, %v57
  %v73 = vpack.c.b16 %v60, %v59
  %v74 = vpack.c.b16 %v62, %v61
  %v75 = vpack.c.b16 %v64, %v63
  %v76 = vpack.c.b16 %v66, %v65
  %v77 = vpack.c.b16 %v68, %v67
  %v78 = vpack.c.b16 %v70, %v69
  %vm79 = vcmask 31744
  %v81 = vsel %vm79, %v71, 0
  %v84 = vsel %vm79, %v72, 0
  %v87 = vsel %vm79, %v73, 0
  %v90 = vsel %vm79, %v74, 0
  %v93 = vsel %vm79, %v75, 0
  %v96 = vsel %vm79, %v76, 0
  %v99 = vsel %vm79, %v77, 0
  %v102 = vsel %vm79, %v78, 0
  %vm104 = vcmask 1041408
  %v106 = vsel %vm104, %v38, 0
  %108 = vmatprep.subr.bf16.mxu0 0
  %109 = vmatpush1.bf16.msra.mxu0 %v106
  %110 = vmatprep.subr.bf16.mxu0 0
  %111 = vmatpush1.bf16.msra.mxu0 0
  %112 = vmatprep.subr.bf16.mxu0 0
  %113 = vmatpush1.bf16.msra.mxu0 0
  %114 = vmatprep.subr.bf16.mxu0 0
  %115 = vmatpush1.bf16.msra.mxu0 0
  %116 = vmatprep.subr.bf16.mxu0 0
  %117 = vmatpush1.bf16.msra.mxu0 0
  %118 = vmatprep.subr.bf16.mxu0 0
  %119 = vmatpush1.bf16.msra.mxu0 0
  %120 = vmatprep.subr.bf16.mxu0 0
  %121 = vmatpush1.bf16.msra.mxu0 0
  %122 = vmatprep.subr.bf16.mxu0 0
  %123 = vmatpush1.bf16.msra.mxu0 0
  %124 = vmatprep.subr.bf16.mxu0 0
  %125 = vmatpush1.bf16.msra.mxu0 0
  %126 = vmatprep.subr.bf16.mxu0 0
  %127 = vmatpush1.bf16.msra.mxu0 0
  %128 = vmatprep.subr.bf16.mxu0 0
  %129 = vmatpush1.bf16.msra.mxu0 0
  %130 = vmatprep.subr.bf16.mxu0 0
  %131 = vmatpush1.bf16.msra.mxu0 0
  %132 = vmatprep.subr.bf16.mxu0 0
  %133 = vmatpush1.bf16.msra.mxu0 0
  %134 = vmatprep.subr.bf16.mxu0 0
  %135 = vmatpush1.bf16.msra.mxu0 0
  %136 = vmatprep.subr.bf16.mxu0 0
  %137 = vmatpush1.bf16.msra.mxu0 0
  %138 = vmatprep.subr.bf16.mxu0 0
  %139 = vmatpush1.bf16.msra.mxu0 0
  %140 = vmatprep.mubr.bf16.mxu0 0
  %141 = vmatmul.mubr.bf16.gmra.mrb[0].mxu0 %v81
  %v142 = vpop.f32.mrb[0].mxu0
  %v143 = vadd.f32 0.0, %v142
  %v144 = vpop.f32.mrb[0].mxu0
  %v145 = vpop.f32.mrb[0].mxu0
  %v146 = vadd.f32 0.0, %v145
  %v147 = vpop.f32.mrb[0].mxu0
  %148 = vmatprep.mubr.bf16.mxu0 0
  %149 = vmatmul.mubr.bf16.gmra.mrb[0].mxu0 %v84
  %v150 = vpop.f32.mrb[0].mxu0
  %v151 = vadd.f32 0.0, %v150
  %v152 = vpop.f32.mrb[0].mxu0
  %v153 = vpop.f32.mrb[0].mxu0
  %v154 = vadd.f32 0.0, %v153
  %v155 = vpop.f32.mrb[0].mxu0
  %156 = vmatprep.mubr.bf16.mxu0 0
  %157 = vmatmul.mubr.bf16.gmra.mrb[0].mxu0 %v87
  %v158 = vpop.f32.mrb[0].mxu0
  %v159 = vadd.f32 0.0, %v158
  %v160 = vpop.f32.mrb[0].mxu0
  %v161 = vpop.f32.mrb[0].mxu0
  %v162 = vadd.f32 0.0, %v161
  %v163 = vpop.f32.mrb[0].mxu0
  %164 = vmatprep.mubr.bf16.mxu0 0
  %165 = vmatmul.mubr.bf16.gmra.mrb[0].mxu0 %v90
  %v166 = vpop.f32.mrb[0].mxu0
  %v167 = vadd.f32 0.0, %v166
  %v168 = vpop.f32.mrb[0].mxu0
  %v169 = vpop.f32.mrb[0].mxu0
  %v170 = vadd.f32 0.0, %v169
  %v171 = vpop.f32.mrb[0].mxu0
  %172 = vmatprep.mubr.bf16.mxu0 0
  %173 = vmatmul.mubr.bf16.gmra.mrb[0].mxu0 %v93
  %v174 = vpop.f32.mrb[0].mxu0
  %v175 = vadd.f32 0.0, %v174
  %v176 = vpop.f32.mrb[0].mxu0
  %v177 = vpop.f32.mrb[0].mxu0
  %v178 = vadd.f32 0.0, %v177
  %v179 = vpop.f32.mrb[0].mxu0
  %180 = vmatprep.mubr.bf16.mxu0 0
  %181 = vmatmul.mubr.bf16.gmra.mrb[0].mxu0 %v96
  %v182 = vpop.f32.mrb[0].mxu0
  %v183 = vadd.f32 0.0, %v182
  %v184 = vpop.f32.mrb[0].mxu0
  %v185 = vpop.f32.mrb[0].mxu0
  %v186 = vadd.f32 0.0, %v185
  %v187 = vpop.f32.mrb[0].mxu0
  %188 = vmatprep.mubr.bf16.mxu0 0
  %189 = vmatmul.mubr.bf16.gmra.mrb[0].mxu0 %v99
  %v190 = vpop.f32.mrb[0].mxu0
  %v191 = vadd.f32 0.0, %v190
  %v192 = vpop.f32.mrb[0].mxu0
  %v193 = vpop.f32.mrb[0].mxu0
  %v194 = vadd.f32 0.0, %v193
  %v195 = vpop.f32.mrb[0].mxu0
  %196 = vmatprep.mubr.bf16.mxu0 0
  %197 = vmatmul.mubr.bf16.gmra.mrb[0].mxu0 %v102
  %v198 = vpop.f32.mrb[0].mxu0
  %v199 = vadd.f32 0.0, %v198
  %v200 = vpop.f32.mrb[0].mxu0
  %v201 = vpop.f32.mrb[0].mxu0
  %v202 = vadd.f32 0.0, %v201
  %v203 = vpop.f32.mrb[0].mxu0
  %204 = vdwg.mxu0
  %vm205 = vcmask 523264
  %206 = vst.msk [vmem:[%s2] sm:$0xff] %vm205, %v143
  %207 = vst.msk [vmem:[%s2 + $0x8] sm:$0xff] %vm205, %v146
  %208 = vst.msk [vmem:[%s2 + $0x10] sm:$0xff] %vm205, %v151
  %209 = vst.msk [vmem:[%s2 + $0x18] sm:$0xff] %vm205, %v154
  %210 = vst.msk [vmem:[%s2 + $0x20] sm:$0xff] %vm205, %v159
  %211 = vst.msk [vmem:[%s2 + $0x28] sm:$0xff] %vm205, %v162
  %212 = vst.msk [vmem:[%s2 + $0x30] sm:$0xff] %vm205, %v167
  %213 = vst.msk [vmem:[%s2 + $0x38] sm:$0xff] %vm205, %v170
  %214 = vst.msk [vmem:[%s2 + $0x40] sm:$0xff] %vm205, %v175
  %215 = vst.msk [vmem:[%s2 + $0x48] sm:$0xff] %vm205, %v178
  %216 = vst.msk [vmem:[%s2 + $0x50] sm:$0xff] %vm205, %v183
  %217 = vst.msk [vmem:[%s2 + $0x58] sm:$0xff] %vm205, %v186
  %218 = vst.msk [vmem:[%s2 + $0x60] sm:$0xff] %vm205, %v191
  %219 = vst.msk [vmem:[%s2 + $0x68] sm:$0xff] %vm205, %v194
  %220 = vst.msk [vmem:[%s2 + $0x70] sm:$0xff] %vm205, %v199
  %221 = vst.msk [vmem:[%s2 + $0x78] sm:$0xff] %vm205, %v202
  %v222 = vld [vmem:[%s3] sm:$0x1]
  %v223 = vsel %vm205, %v143, 0.0
  %v224 = vsel %vm205, %v146, 0.0
  %v225 = vadd.f32 %v223, %v224
  %v226 = vsel %vm205, %v151, 0.0
  %v227 = vadd.f32 %v225, %v226
  %v228 = vsel %vm205, %v154, 0.0
  %v229 = vadd.f32 %v227, %v228
  %v230 = vsel %vm205, %v159, 0.0
  %v231 = vadd.f32 %v229, %v230
  %v232 = vsel %vm205, %v162, 0.0
  %v233 = vadd.f32 %v231, %v232
  %v234 = vsel %vm205, %v167, 0.0
  %v235 = vadd.f32 %v233, %v234
  %v236 = vsel %vm205, %v170, 0.0
  %v237 = vadd.f32 %v235, %v236
  %v238 = vsel %vm205, %v175, 0.0
  %v239 = vadd.f32 %v237, %v238
  %v240 = vsel %vm205, %v178, 0.0
  %v241 = vadd.f32 %v239, %v240
  %v242 = vsel %vm205, %v183, 0.0
  %v243 = vadd.f32 %v241, %v242
  %v244 = vsel %vm205, %v186, 0.0
  %v245 = vadd.f32 %v243, %v244
  %v246 = vsel %vm205, %v191, 0.0
  %v247 = vadd.f32 %v245, %v246
  %v248 = vsel %vm205, %v194, 0.0
  %v249 = vadd.f32 %v247, %v248
  %v250 = vsel %vm205, %v199, 0.0
  %v251 = vadd.f32 %v249, %v250
  %v252 = vsel %vm205, %v202, 0.0
  %v253 = vadd.f32 %v251, %v252
  %v254 = vrot.slane %v253, 4
  %v255 = vadd.f32 %v253, %v254
  %v256 = vrot.slane %v255, 2
  %v257 = vadd.f32 %v255, %v256
  %v258 = vrot.slane %v257, 1
  %v259 = vadd.f32 %v257, %v258
  %v260 = vadd.f32 %v222, %v259
  %vm261 = vcmask 516096
  %262 = vst.msk [vmem:[%s3] sm:$0x1] %vm261, %v260
  %v263 = vld [vmem:[%s4] sm:$0x1]
  %v264 = vmul.f32 %v143, %v143
  %v265 = vmul.f32 %v146, %v146
  %v266 = vmul.f32 %v151, %v151
  %v267 = vmul.f32 %v154, %v154
  %v268 = vmul.f32 %v159, %v159
  %v269 = vmul.f32 %v162, %v162
  %v270 = vmul.f32 %v167, %v167
  %v271 = vmul.f32 %v170, %v170
  %v272 = vmul.f32 %v175, %v175
  %v273 = vmul.f32 %v178, %v178
  %v274 = vmul.f32 %v183, %v183
  %v275 = vmul.f32 %v186, %v186
  %v276 = vmul.f32 %v191, %v191
  %v277 = vmul.f32 %v194, %v194
  %v278 = vmul.f32 %v199, %v199
  %v279 = vmul.f32 %v202, %v202
  %v280 = vsel %vm205, %v264, 0.0
  %v281 = vsel %vm205, %v265, 0.0
  %v282 = vadd.f32 %v280, %v281
  %v283 = vsel %vm205, %v266, 0.0
  %v284 = vadd.f32 %v282, %v283
  %v285 = vsel %vm205, %v267, 0.0
  %v286 = vadd.f32 %v284, %v285
  %v287 = vsel %vm205, %v268, 0.0
  %v288 = vadd.f32 %v286, %v287
  %v289 = vsel %vm205, %v269, 0.0
  %v290 = vadd.f32 %v288, %v289
  %v291 = vsel %vm205, %v270, 0.0
  %v292 = vadd.f32 %v290, %v291
  %v293 = vsel %vm205, %v271, 0.0
  %v294 = vadd.f32 %v292, %v293
  %v295 = vsel %vm205, %v272, 0.0
  %v296 = vadd.f32 %v294, %v295
  %v297 = vsel %vm205, %v273, 0.0
  %v298 = vadd.f32 %v296, %v297
  %v299 = vsel %vm205, %v274, 0.0
  %v300 = vadd.f32 %v298, %v299
  %v301 = vsel %vm205, %v275, 0.0
  %v302 = vadd.f32 %v300, %v301
  %v303 = vsel %vm205, %v276, 0.0
  %v304 = vadd.f32 %v302, %v303
  %v305 = vsel %vm205, %v277, 0.0
  %v306 = vadd.f32 %v304, %v305
  %v307 = vsel %vm205, %v278, 0.0
  %v308 = vadd.f32 %v306, %v307
  %v309 = vsel %vm205, %v279, 0.0
  %v310 = vadd.f32 %v308, %v309
  %v311 = vrot.slane %v310, 4
  %v312 = vadd.f32 %v310, %v311
  %v313 = vrot.slane %v312, 2
  %v314 = vadd.f32 %v312, %v313
  %v315 = vrot.slane %v314, 1
  %v316 = vadd.f32 %v314, %v315
  %v317 = vadd.f32 %v263, %v316
  %318 = vst.msk [vmem:[%s4] sm:$0x1] %vm261, %v317
  // Predicated region
  $region14: #{generater_block_forward.2} parent=0 // pred_check
    _
  $region15: #{generater_block_forward.2} parent=0 // pred_check_branch
    %320 = sbr.rel (0) target = $region17
  $region16: #{generater_block_forward.2} parent=0 // pred_region
    _
  $region17: #{generater_block_forward.2} parent=0 // pred_fallthru
    _
  // Predicated region
  $region18: #{generater_block_forward.2} parent=0 // pred_check
    _
  $region19: #{generater_block_forward.2} parent=0 // pred_check_branch
    %322 = sbr.rel (0) target = $region21
  $region20: #{generater_block_forward.2} parent=0 // pred_region
    _
  $region21: #{generater_block_forward.2} parent=0 // pred_fallthru
    _
  // Predicated region
  $region22: #{generater_block_forward.2} parent=0 // pred_check
    _
  $region23: #{generater_block_forward.2} parent=0 // pred_check_branch
    %324 = sbr.rel (0) target = $region25
  $region24: #{generater_block_forward.2} parent=0 // pred_region
    _
  $region25: #{generater_block_forward.2} parent=0 // pred_fallthru
    _
  // Predicated region
  $region26: #{generater_block_forward.2} parent=0 // pred_check
    _
  $region27: #{generater_block_forward.2} parent=0 // pred_check_branch
    %326 = sbr.rel (0) target = $region29
  $region28: #{generater_block_forward.2} parent=0 // pred_region
    _
  $region29: #{generater_block_forward.2} parent=0 // pred_fallthru
    _
  // Predicated region
  $region30: #{generater_block_forward.2} parent=0 // pred_check
    _
  $region31: #{generater_block_forward.2} parent=0 // pred_check_branch
    %328 = sbr.rel (0) target = $region33
  $region32: #{generater_block_forward.2} parent=0 // pred_region
    _
  $region33: #{generater_block_forward.2} parent=0 // pred_fallthru
    _
  // Predicated region
  $region34: #{generater_block_forward.2} parent=0 // pred_check
    _
  $region35: #{generater_block_forward.2} parent=0 // pred_check_branch
    %330 = sbr.rel (0) target = $region37
  $region36: #{generater_block_forward.2} parent=0 // pred_region
    _
  $region37: #{generater_block_forward.2} parent=0 // pred_fallthru
    _

// kernel: generater_block_forward.3
$region0: #{generater_block_forward.3}
  #allocation0 [shape = 'u32[]', space=smem, size = 0x4, offset = 0x4, fixed_abs, tag = 'smem constant byte address 0x4 - core index']
  #allocation1 [shape = 'u32[144,128]{1,0:T(1,128)}', space=vmem, size = 0x12000, scoped, tag = 'internal scratch']
  %s0 = inlined_call_operand.vmem [shape: f32[2,8,512], index: 0, kind: input, shape index: {}]
  %s1 = inlined_call_operand.vmem [shape: f32[8,1], index: 1, kind: input, shape index: {}]
  %s2 = inlined_call_operand.vmem [shape: f32[8,1], index: 2, kind: input, shape index: {}]
  %s3 = inlined_call_operand.vmem [shape: f32[2,8,512], index: 3, kind: output, shape index: {}]
  %s4 = sld [smem:[#allocation0]]
  $region22: #{generater_block_forward.3} parent=0
    _
  %s6 = ssub.s32 1, %s4
  %s7 = scalar_select 0, %s6, %s4
  // Predicated region
  $region2: #{generater_block_forward.3} parent=0 // pred_check
    _
  $region3: #{generater_block_forward.3} parent=0 // pred_check_branch
    %9 = sbr.rel (0) target = $region5
  $region4: #{generater_block_forward.3} parent=0 // pred_region
    _
  $region5: #{generater_block_forward.3} parent=0 // pred_fallthru
    _
  // Predicated region
  $region6: #{generater_block_forward.3} parent=0 // pred_check
    _
  $region7: #{generater_block_forward.3} parent=0 // pred_check_branch
    %11 = sbr.rel (0) target = $region9
  $region8: #{generater_block_forward.3} parent=0 // pred_region
    _
  $region9: #{generater_block_forward.3} parent=0 // pred_fallthru
    _
  // Predicated region
  $region10: #{generater_block_forward.3} parent=0 // pred_check
    _
  $region11: #{generater_block_forward.3} parent=0 // pred_check_branch
    %13 = sbr.rel (0) target = $region13
  $region12: #{generater_block_forward.3} parent=0 // pred_region
    _
  $region13: #{generater_block_forward.3} parent=0 // pred_fallthru
    _
  %v14 = vld [vmem:[%s0] sm:$0xff]
  %v15 = vld [vmem:[%s0 + $0x8] sm:$0xff]
  %v16 = vld [vmem:[%s0 + $0x10] sm:$0xff]
  %v17 = vld [vmem:[%s0 + $0x18] sm:$0xff]
  %v18 = vld [vmem:[%s0 + $0x20] sm:$0xff]
  %v19 = vld [vmem:[%s0 + $0x28] sm:$0xff]
  %v20 = vld [vmem:[%s0 + $0x30] sm:$0xff]
  %v21 = vld [vmem:[%s0 + $0x38] sm:$0xff]
  %v22 = vld [vmem:[%s1] sm:$0xff]
  %24 = vset.pattern.permute.xlu0 0
  %25 = vperm.xlu0 %24, %v22
  %v26 = vpop.permute.xlu0 %25
  %v28 = vmul.f32 %v14, %v26
  %v29 = vmul.f32 %v15, %v26
  %v30 = vmul.f32 %v16, %v26
  %v31 = vmul.f32 %v17, %v26
  %v32 = vmul.f32 %v18, %v26
  %v33 = vmul.f32 %v19, %v26
  %v34 = vmul.f32 %v20, %v26
  %v35 = vmul.f32 %v21, %v26
  %v36 = vld [vmem:[%s2] sm:$0xff]
  %38 = vset.pattern.permute.xlu0 0
  %39 = vperm.xlu0 %38, %v36
  %v40 = vpop.permute.xlu0 %39
  %v42 = vadd.f32 %v28, %v40
  %v43 = vadd.f32 %v29, %v40
  %v44 = vadd.f32 %v30, %v40
  %v45 = vadd.f32 %v31, %v40
  %v46 = vadd.f32 %v32, %v40
  %v47 = vadd.f32 %v33, %v40
  %v48 = vadd.f32 %v34, %v40
  %v49 = vadd.f32 %v35, %v40
  %v50 = vmax.f32 %v42, 0.0
  %v51 = vmax.f32 %v43, 0.0
  %v52 = vmax.f32 %v44, 0.0
  %v53 = vmax.f32 %v45, 0.0
  %v54 = vmax.f32 %v46, 0.0
  %v55 = vmax.f32 %v47, 0.0
  %v56 = vmax.f32 %v48, 0.0
  %v57 = vmax.f32 %v49, 0.0
  %58 = vst [vmem:[%s3] sm:$0xff] %v50
  %59 = vst [vmem:[%s3 + $0x8] sm:$0xff] %v51
  %60 = vst [vmem:[%s3 + $0x10] sm:$0xff] %v52
  %61 = vst [vmem:[%s3 + $0x18] sm:$0xff] %v53
  %62 = vst [vmem:[%s3 + $0x20] sm:$0xff] %v54
  %63 = vst [vmem:[%s3 + $0x28] sm:$0xff] %v55
  %64 = vst [vmem:[%s3 + $0x30] sm:$0xff] %v56
  %65 = vst [vmem:[%s3 + $0x38] sm:$0xff] %v57
  // Predicated region
  $region14: #{generater_block_forward.3} parent=0 // pred_check
    _
  $region15: #{generater_block_forward.3} parent=0 // pred_check_branch
    %67 = sbr.rel (0) target = $region17
  $region16: #{generater_block_forward.3} parent=0 // pred_region
    _
  $region17: #{generater_block_forward.3} parent=0 // pred_fallthru
    _
  // Predicated region
  $region18: #{generater_block_forward.3} parent=0 // pred_check
    _
  $region19: #{generater_block_forward.3} parent=0 // pred_check_branch
    %69 = sbr.rel (0) target = $region21
  $region20: #{generater_block_forward.3} parent=0 // pred_region
    _
  $region21: #{generater_block_forward.3} parent=0 // pred_fallthru
    _

</llo_original>
